<compile_context>
chip_gen: v6e
topology: v6e:2x2x1
jax: 0.10.0
libtpu: 0.0.40
codegen_flags: <defaults>
</compile_context>

<pallas_src>
import math

import jax
import jax.numpy as jnp
import numpy as np
from jax.experimental import pallas as pl
from jax.experimental.pallas import tpu as pltpu

LN_EPS = 1e-5


def _round_up(n, m):
    return ((n + m - 1) // m) * m


def _vmem_budget_bytes():
    """Generation-aware VMEM budget (75% of physical when discoverable)."""
    try:
        info = pltpu.get_tpu_info()
        cap = getattr(info, "vmem_capacity_bytes", None)
        if cap:
            return int(0.75 * cap)
    except Exception:
        pass
    # Conservative fallback: fits v7x's 64 MiB physical VMEM with headroom and
    # is well inside v5e/v6e's 128 MiB.
    return 48 * 1024 * 1024


def _plan_block_o(I, O, G, budget, weight_bytes):
    """Pick the output tile so double-buffered weight blocks fit in VMEM."""
    K = G * I
    block_o = _round_up(O, 128)
    w_budget = int(0.6 * budget)
    # TODO(synk): for very large I (>~2K) add an inner "arbitrary" grid axis
    # tiling only the weight K dimension with a f32 VMEM accumulator.
    while block_o > 128 and 2 * block_o * (K + I) * weight_bytes > w_budget:
        block_o = _round_up(block_o // 2, 128)
    O_pad = _round_up(O, block_o)
    return block_o, O_pad


def _plan_block_b(B, I, G, block_o, budget, weight_bytes):
    """Pick the batch tile from the VMEM budget left after the weight blocks."""
    K = G * I
    weights_bytes = 2 * block_o * (K + I) * weight_bytes + 2 * block_o * 4
    remaining = max(budget - weights_bytes, 4 * 1024 * 1024)
    # Per batch-row bytes: x (double-buffered f32) + out (double-buffered f32)
    # + basis / silu / LayerNorm temporaries.
    per_row = 2 * I * 4 + 2 * block_o * 4 + (K + 3 * I) * 4
    block_b = min(_round_up(max(B, 1), 8), 512)
    while block_b > 8 and block_b * per_row > remaining:
        block_b = _round_up(block_b // 2, 8)
    B_pad = _round_up(B, block_b)
    return block_b, B_pad


def _make_fastkan_kernel(grid_scaled, inv_denom, ln_eps, matmul_dtype):
    """Builds the kernel with the (compile-time constant) RBF grid baked in."""
    grid_scaled = tuple(float(g) for g in grid_scaled)
    inv_denom = float(inv_denom)
    ln_eps = float(ln_eps)

    def kernel(x_ref, ln_g_ref, ln_b_ref, sw_ref, bw_ref, bb_ref, out_ref):
        x = x_ref[...]                                     # (tb, I) f32

        # ---- LayerNorm over the feature axis (exact under batch tiling) ----
        mean = jnp.mean(x, axis=1, keepdims=True)
        xc = x - mean
        var = jnp.mean(xc * xc, axis=1, keepdims=True)
        xn = xc * jax.lax.rsqrt(var + ln_eps)
        xn = xn * ln_g_ref[...] + ln_b_ref[...]            # (tb, I)

        # 1/denominator hoisted: the per-element path is mul + exp only.
        xs = xn * inv_denom                                # (tb, I)

        # ---- RBF basis, grid-major lane layout (column = g*I + i) ----
        # Matches the one-time (O, G*I) weight reorder in fastkan_prepare_params.
        # Never materializes the rank-3 (tb, I, G) tensor; one (tb, G*I) slab
        # feeds a single full-depth MXU contraction instead of G shallow ones.
        slabs = [jnp.exp(-jnp.square(xs - g_val)) for g_val in grid_scaled]
        basis = jnp.concatenate(slabs, axis=-1)            # (tb, G*I)

        # ---- base branch: SiLU(x) ----
        silu_x = x * jax.nn.sigmoid(x)                     # (tb, I)

        # ---- MXU matmuls: bf16 operands, f32 accumulation, no .T in-kernel ----
        acc = jax.lax.dot_general(
            basis.astype(matmul_dtype), sw_ref[...],
            dimension_numbers=(((1,), (1,)), ((), ())),
            preferred_element_type=jnp.float32)            # (tb, to)
        acc = acc + jax.lax.dot_general(
            silu_x.astype(matmul_dtype), bw_ref[...],
            dimension_numbers=(((1,), (1,)), ((), ())),
            preferred_element_type=jnp.float32)
        acc = acc + bb_ref[...]

        out_ref[...] = acc.astype(out_ref.dtype)

    return kernel


def fastkan_prepare_params(ln_gamma, ln_beta, spline_weight, base_weight, base_bias,
                           *, grid_min=-2.0, grid_max=2.0, num_grids=8,
                           matmul_dtype=jnp.bfloat16):
    """One-time parameter preparation (reorder / pad / cast) off the call path."""
    O, IG = spline_weight.shape
    I = base_weight.shape[1]
    G = num_grids
    assert IG == I * G, "spline_weight must be (O, I*num_grids)"

    budget = _vmem_budget_bytes()
    wbytes = jnp.dtype(matmul_dtype).itemsize
    block_o, O_pad = _plan_block_o(I, O, G, budget, wbytes)

    denom = (grid_max - grid_min) / (num_grids - 1)
    grid_pts = np.linspace(grid_min, grid_max, num_grids)

    # PyTorch flattens the (B, I, G) basis feature-major (column = i*G + g).
    # The kernel builds its basis slab grid-major (column = g*I + i), so the
    # weight is reordered ONCE here to match.  This is the ordering contract
    # between prep and kernel -- keep them in sync.
    sw = jnp.asarray(spline_weight, jnp.float32).reshape(O, I, G)
    sw = jnp.transpose(sw, (0, 2, 1)).reshape(O, G * I)          # (O, G*I)
    sw = jnp.pad(sw, ((0, O_pad - O), (0, 0))).astype(matmul_dtype)

    bw = jnp.pad(jnp.asarray(base_weight, jnp.float32),
                 ((0, O_pad - O), (0, 0))).astype(matmul_dtype)
    bb = jnp.pad(jnp.asarray(base_bias, jnp.float32),
                 (0, O_pad - O)).reshape(1, O_pad)

    return dict(
        I=I, O=O, G=G, O_pad=O_pad, block_o=block_o,
        grid_scaled=tuple(float(v) for v in (grid_pts / denom)),
        inv_denom=float(1.0 / denom),
        matmul_dtype=matmul_dtype,
        vmem_budget=int(budget),
        ln_gamma=jnp.asarray(ln_gamma, jnp.float32).reshape(1, I),
        ln_beta=jnp.asarray(ln_beta, jnp.float32).reshape(1, I),
        spline_weight=sw, base_weight=bw, base_bias=bb,
    )


def fastkan_forward(x, params):
    I, O, G = params["I"], params["O"], params["G"]
    O_pad, block_o = params["O_pad"], params["block_o"]
    budget = params["vmem_budget"]
    wbytes = jnp.dtype(params["matmul_dtype"]).itemsize
    K = G * I

    B = x.shape[0]
    block_b, B_pad = _plan_block_b(B, I, G, block_o, budget, wbytes)

    # v7x megacore: with a single O tile, make sure the (parallel) batch axis
    # has >= 2 blocks when the batch is big enough so both TensorCores run.
    if O_pad // block_o == 1 and B_pad // block_b == 1 and block_b >= 16:
        block_b = _round_up(block_b // 2, 8)
        B_pad = _round_up(B, block_b)

    # Zero-padded batch rows pass through LayerNorm with var=0; rsqrt(0+eps)
    # is finite, so padded rows stay finite and are sliced off below (benign).
    x_p = jnp.pad(jnp.asarray(x, jnp.float32), ((0, B_pad - B), (0, 0)))

    no, nb = O_pad // block_o, B_pad // block_b

    # Advisory cost estimate so XLA schedules around this exp-heavy call.
    flops = int(2 * B_pad * O_pad * (K + I) + 16 * B_pad * I * G)
    transcendentals = int(B_pad * I * (G + 1))             # G exps + 1 sigmoid / elem
    bytes_accessed = int(
        4 * x_p.size * no
        + wbytes * (params["spline_weight"].size + params["base_weight"].size)
        + 4 * (params["base_bias"].size + 2 * I)
        + 4 * B_pad * O_pad)

    kernel = _make_fastkan_kernel(params["grid_scaled"], params["inv_denom"],
                                  LN_EPS, params["matmul_dtype"])

    out = pl.pallas_call(
        kernel,
        out_shape=jax.ShapeDtypeStruct((B_pad, O_pad), jnp.float32),
        grid_spec=pltpu.PrefetchScalarGridSpec(
            num_scalar_prefetch=0,
            # O outermost, B innermost: weight block indices are constant along
            # the inner loop -> weights DMA'd once per O tile (once total when
            # no == 1); only the small x tile is re-fetched per step.
            grid=(no, nb),
            in_specs=[
                pl.BlockSpec((block_b, I), lambda o, b: (b, 0)),        # x
                pl.BlockSpec((1, I), lambda o, b: (0, 0)),              # LN gamma
                pl.BlockSpec((1, I), lambda o, b: (0, 0)),              # LN beta
                pl.BlockSpec((block_o, K), lambda o, b: (o, 0)),        # spline W (grid-major fused)
                pl.BlockSpec((block_o, I), lambda o, b: (o, 0)),        # base W
                pl.BlockSpec((1, block_o), lambda o, b: (0, o)),        # base bias
            ],
            out_specs=pl.BlockSpec((block_b, block_o), lambda o, b: (b, o)),
        ),
        compiler_params=pltpu.CompilerParams(
            dimension_semantics=("parallel", "parallel"),
            vmem_limit_bytes=int(budget)),
        cost_estimate=pl.CostEstimate(
            flops=flops, transcendentals=transcendentals,
            bytes_accessed=bytes_accessed),
    )(x_p, params["ln_gamma"], params["ln_beta"],
      params["spline_weight"], params["base_weight"], params["base_bias"])

    return out[:B, :O]


def fastkan_reference(x, ln_gamma, ln_beta, spline_weight, base_weight, base_bias,
                      *, grid_min=-2.0, grid_max=2.0, num_grids=8):
    """Pure-JAX f32 reference matching the PyTorch forward."""
    mean = jnp.mean(x, axis=-1, keepdims=True)
    var = jnp.mean((x - mean) ** 2, axis=-1, keepdims=True)
    xn = (x - mean) / jnp.sqrt(var + LN_EPS) * ln_gamma[None] + ln_beta[None]
    grid_pts = jnp.asarray(np.linspace(grid_min, grid_max, num_grids), jnp.float32)
    denom = (grid_max - grid_min) / (num_grids - 1)
    basis = jnp.exp(-(((xn[..., None] - grid_pts) / denom) ** 2))   # (B, I, G)
    spline_out = basis.reshape(x.shape[0], -1) @ spline_weight.T
    base = jax.nn.silu(x) @ base_weight.T + base_bias[None]
    return spline_out + base


if __name__ == "__main__":
    input_dim = 16
    output_dim = 32
    num_grids = 8
    batch = 8

    key = jax.random.PRNGKey(0)
    kx, ksw, kbw, kbb = jax.random.split(key, 4)

    x = jax.random.normal(kx, (batch, input_dim), dtype=jnp.float32)

    # Parameter init mirroring the module:
    #   LayerNorm: gamma=1, beta=0
    #   SplineLinear: trunc_normal(std=0.1) (plain normal*0.1 as example data)
    #   base Linear: kaiming_uniform_(a=sqrt(5)) -> U(-1/sqrt(I), 1/sqrt(I))
    ln_gamma = jnp.ones((input_dim,), dtype=jnp.float32)
    ln_beta = jnp.zeros((input_dim,), dtype=jnp.float32)
    spline_weight = 0.1 * jax.random.normal(
        ksw, (output_dim, input_dim * num_grids), dtype=jnp.float32)
    bound = 1.0 / math.sqrt(input_dim)
    base_weight = jax.random.uniform(kbw, (output_dim, input_dim),
                                     minval=-bound, maxval=bound, dtype=jnp.float32)
    base_bias = jax.random.uniform(kbb, (output_dim,),
                                   minval=-bound, maxval=bound, dtype=jnp.float32)

    params = fastkan_prepare_params(ln_gamma, ln_beta, spline_weight,
                                    base_weight, base_bias, num_grids=num_grids)
    out = fastkan_forward(x, params)
    out = jax.block_until_ready(out)

    ref = fastkan_reference(x, ln_gamma, ln_beta, spline_weight, base_weight,
                            base_bias, num_grids=num_grids)
    # bf16 MXU operands (f32 accumulate) -> looser tolerance than pure f32.
    np.testing.assert_allclose(np.asarray(out), np.asarray(ref),
                               rtol=5e-2, atol=5e-2)

    print("KERNEL_OK")
</pallas_src>

<mosaic_0001>
module attributes {stable_mosaic.version = 11 : i64} {
  func.func @kernel(%arg0: i32, %arg1: i32, %arg2: memref<8x16xf32, #tpu.memory_space<vmem>>, %arg3: memref<1x16xf32, #tpu.memory_space<vmem>>, %arg4: memref<1x16xf32, #tpu.memory_space<vmem>>, %arg5: memref<128x128xbf16, #tpu.memory_space<vmem>>, %arg6: memref<128x16xbf16, #tpu.memory_space<vmem>>, %arg7: memref<1x128xf32, #tpu.memory_space<vmem>>, %arg8: memref<8x128xf32, #tpu.memory_space<vmem>>) attributes {dimension_semantics = [#tpu.dimension_semantics<parallel>, #tpu.dimension_semantics<parallel>], iteration_bounds = array<i64: 1, 1>, scalar_prefetch = 0 : i64, scratch_operands = 0 : i64, tpu.core_type = #tpu.core_type<tc>, window_params = [{transform_indices = @transform_0, window_bounds = array<i64: 8, 16>}, {pipeline_mode = #tpu.pipeline_mode<synchronous>, transform_indices = @transform_1, window_bounds = array<i64: 1, 16>}, {pipeline_mode = #tpu.pipeline_mode<synchronous>, transform_indices = @transform_2, window_bounds = array<i64: 1, 16>}, {transform_indices = @transform_3, window_bounds = array<i64: 128, 128>}, {transform_indices = @transform_4, window_bounds = array<i64: 128, 16>}, {transform_indices = @transform_5, window_bounds = array<i64: 1, 128>}, {transform_indices = @transform_6, window_bounds = array<i64: 8, 128>}]} {
    %c0 = arith.constant 0 : index
    %c0_0 = arith.constant 0 : index
    %0 = vector.load %arg2[%c0, %c0_0] : memref<8x16xf32, #tpu.memory_space<vmem>>, vector<8x16xf32>
    %cst = arith.constant dense<0.000000e+00> : vector<8xf32>
    %1 = vector.multi_reduction <add>, %0, %cst [1] : vector<8x16xf32> to vector<8xf32>
    %2 = vector.shape_cast %1 : vector<8xf32> to vector<8x1xf32>
    %cst_1 = arith.constant 1.600000e+01 : f32
    %3 = vector.broadcast %cst_1 : f32 to vector<8x1xf32>
    %4 = arith.divf %2, %3 : vector<8x1xf32>
    %5 = vector.broadcast %4 : vector<8x1xf32> to vector<8x16xf32>
    %6 = arith.subf %0, %5 : vector<8x16xf32>
    %7 = arith.mulf %6, %6 : vector<8x16xf32>
    %cst_2 = arith.constant dense<0.000000e+00> : vector<8xf32>
    %8 = vector.multi_reduction <add>, %7, %cst_2 [1] : vector<8x16xf32> to vector<8xf32>
    %9 = vector.shape_cast %8 : vector<8xf32> to vector<8x1xf32>
    %cst_3 = arith.constant 1.600000e+01 : f32
    %10 = vector.broadcast %cst_3 : f32 to vector<8x1xf32>
    %11 = arith.divf %9, %10 : vector<8x1xf32>
    %cst_4 = arith.constant 9.99999974E-6 : f32
    %12 = vector.broadcast %cst_4 : f32 to vector<8x1xf32>
    %13 = arith.addf %11, %12 : vector<8x1xf32>
    %14 = math.rsqrt %13 : vector<8x1xf32>
    %15 = vector.broadcast %14 : vector<8x1xf32> to vector<8x16xf32>
    %16 = arith.mulf %6, %15 : vector<8x16xf32>
    %c0_5 = arith.constant 0 : index
    %c0_6 = arith.constant 0 : index
    %17 = vector.load %arg3[%c0_5, %c0_6] : memref<1x16xf32, #tpu.memory_space<vmem>>, vector<1x16xf32>
    %18 = vector.broadcast %17 : vector<1x16xf32> to vector<8x16xf32>
    %19 = arith.mulf %16, %18 : vector<8x16xf32>
    %c0_7 = arith.constant 0 : index
    %c0_8 = arith.constant 0 : index
    %20 = vector.load %arg4[%c0_7, %c0_8] : memref<1x16xf32, #tpu.memory_space<vmem>>, vector<1x16xf32>
    %21 = vector.broadcast %20 : vector<1x16xf32> to vector<8x16xf32>
    %22 = arith.addf %19, %21 : vector<8x16xf32>
    %cst_9 = arith.constant 1.750000e+00 : f32
    %23 = vector.broadcast %cst_9 : f32 to vector<8x16xf32>
    %24 = arith.mulf %22, %23 : vector<8x16xf32>
    %cst_10 = arith.constant -3.500000e+00 : f32
    %25 = vector.broadcast %cst_10 : f32 to vector<8x16xf32>
    %26 = arith.subf %24, %25 : vector<8x16xf32>
    %27 = arith.mulf %26, %26 : vector<8x16xf32>
    %cst_11 = arith.constant 0.000000e+00 : f32
    %28 = vector.broadcast %cst_11 : f32 to vector<8x16xf32>
    %29 = arith.subf %28, %27 : vector<8x16xf32>
    %30 = math.exp %29 : vector<8x16xf32>
    %cst_12 = arith.constant -2.500000e+00 : f32
    %31 = vector.broadcast %cst_12 : f32 to vector<8x16xf32>
    %32 = arith.subf %24, %31 : vector<8x16xf32>
    %33 = arith.mulf %32, %32 : vector<8x16xf32>
    %cst_13 = arith.constant 0.000000e+00 : f32
    %34 = vector.broadcast %cst_13 : f32 to vector<8x16xf32>
    %35 = arith.subf %34, %33 : vector<8x16xf32>
    %36 = math.exp %35 : vector<8x16xf32>
    %cst_14 = arith.constant -1.500000e+00 : f32
    %37 = vector.broadcast %cst_14 : f32 to vector<8x16xf32>
    %38 = arith.subf %24, %37 : vector<8x16xf32>
    %39 = arith.mulf %38, %38 : vector<8x16xf32>
    %cst_15 = arith.constant 0.000000e+00 : f32
    %40 = vector.broadcast %cst_15 : f32 to vector<8x16xf32>
    %41 = arith.subf %40, %39 : vector<8x16xf32>
    %42 = math.exp %41 : vector<8x16xf32>
    %cst_16 = arith.constant -5.000000e-01 : f32
    %43 = vector.broadcast %cst_16 : f32 to vector<8x16xf32>
    %44 = arith.subf %24, %43 : vector<8x16xf32>
    %45 = arith.mulf %44, %44 : vector<8x16xf32>
    %cst_17 = arith.constant 0.000000e+00 : f32
    %46 = vector.broadcast %cst_17 : f32 to vector<8x16xf32>
    %47 = arith.subf %46, %45 : vector<8x16xf32>
    %48 = math.exp %47 : vector<8x16xf32>
    %cst_18 = arith.constant 5.000000e-01 : f32
    %49 = vector.broadcast %cst_18 : f32 to vector<8x16xf32>
    %50 = arith.subf %24, %49 : vector<8x16xf32>
    %51 = arith.mulf %50, %50 : vector<8x16xf32>
    %cst_19 = arith.constant 0.000000e+00 : f32
    %52 = vector.broadcast %cst_19 : f32 to vector<8x16xf32>
    %53 = arith.subf %52, %51 : vector<8x16xf32>
    %54 = math.exp %53 : vector<8x16xf32>
    %cst_20 = arith.constant 1.500000e+00 : f32
    %55 = vector.broadcast %cst_20 : f32 to vector<8x16xf32>
    %56 = arith.subf %24, %55 : vector<8x16xf32>
    %57 = arith.mulf %56, %56 : vector<8x16xf32>
    %cst_21 = arith.constant 0.000000e+00 : f32
    %58 = vector.broadcast %cst_21 : f32 to vector<8x16xf32>
    %59 = arith.subf %58, %57 : vector<8x16xf32>
    %60 = math.exp %59 : vector<8x16xf32>
    %cst_22 = arith.constant 2.500000e+00 : f32
    %61 = vector.broadcast %cst_22 : f32 to vector<8x16xf32>
    %62 = arith.subf %24, %61 : vector<8x16xf32>
    %63 = arith.mulf %62, %62 : vector<8x16xf32>
    %cst_23 = arith.constant 0.000000e+00 : f32
    %64 = vector.broadcast %cst_23 : f32 to vector<8x16xf32>
    %65 = arith.subf %64, %63 : vector<8x16xf32>
    %66 = math.exp %65 : vector<8x16xf32>
    %cst_24 = arith.constant 3.500000e+00 : f32
    %67 = vector.broadcast %cst_24 : f32 to vector<8x16xf32>
    %68 = arith.subf %24, %67 : vector<8x16xf32>
    %69 = arith.mulf %68, %68 : vector<8x16xf32>
    %cst_25 = arith.constant 0.000000e+00 : f32
    %70 = vector.broadcast %cst_25 : f32 to vector<8x16xf32>
    %71 = arith.subf %70, %69 : vector<8x16xf32>
    %72 = math.exp %71 : vector<8x16xf32>
    %73 = tpu.concatenate %30, %36, %42, %48, %54, %60, %66, %72 in 1 : vector<8x16xf32>, vector<8x16xf32>, vector<8x16xf32>, vector<8x16xf32>, vector<8x16xf32>, vector<8x16xf32>, vector<8x16xf32>, vector<8x16xf32> -> vector<8x128xf32>
    %74 = arith.negf %0 : vector<8x16xf32>
    %75 = math.exp %74 : vector<8x16xf32>
    %cst_26 = arith.constant 1.000000e+00 : f32
    %76 = vector.broadcast %cst_26 : f32 to vector<8x16xf32>
    %77 = arith.addf %76, %75 : vector<8x16xf32>
    %78 = arith.divf %76, %77 : vector<8x16xf32>
    %79 = arith.mulf %0, %78 : vector<8x16xf32>
    %80 = arith.truncf %73 : vector<8x128xf32> to vector<8x128xbf16>
    %c0_27 = arith.constant 0 : index
    %c0_28 = arith.constant 0 : index
    %81 = vector.load %arg5[%c0_27, %c0_28] : memref<128x128xbf16, #tpu.memory_space<vmem>>, vector<128x128xbf16>
    %cst_29 = arith.constant dense<0.000000e+00> : vector<8x128xf32>
    %82 = tpu.matmul %80, %81, %cst_29 {dimension_numbers = #tpu.dot_dimension_numbers<[1], [1], [0], [0], [0, 0, 1, 0], [], []>} : vector<8x128xbf16>, vector<128x128xbf16>, vector<8x128xf32> -> vector<8x128xf32>
    %83 = arith.truncf %79 : vector<8x16xf32> to vector<8x16xbf16>
    %c0_30 = arith.constant 0 : index
    %c0_31 = arith.constant 0 : index
    %84 = vector.load %arg6[%c0_30, %c0_31] : memref<128x16xbf16, #tpu.memory_space<vmem>>, vector<128x16xbf16>
    %cst_32 = arith.constant dense<0.000000e+00> : vector<8x128xf32>
    %85 = tpu.matmul %83, %84, %cst_32 {dimension_numbers = #tpu.dot_dimension_numbers<[1], [1], [0], [0], [0, 0, 1, 0], [], []>} : vector<8x16xbf16>, vector<128x16xbf16>, vector<8x128xf32> -> vector<8x128xf32>
    %86 = arith.addf %82, %85 : vector<8x128xf32>
    %c0_33 = arith.constant 0 : index
    %c0_34 = arith.constant 0 : index
    %87 = vector.load %arg7[%c0_33, %c0_34] : memref<1x128xf32, #tpu.memory_space<vmem>>, vector<1x128xf32>
    %88 = vector.broadcast %87 : vector<1x128xf32> to vector<8x128xf32>
    %89 = arith.addf %86, %88 : vector<8x128xf32>
    %c0_35 = arith.constant 0 : index
    %c0_36 = arith.constant 0 : index
    %90 = vector.load %arg8[%c0_35, %c0_36] : memref<8x128xf32, #tpu.memory_space<vmem>>, vector<8x128xf32>
    tpu.vector_store %arg8[%c0_35, %c0_36], %89 {strides = array<i32>} : memref<8x128xf32, #tpu.memory_space<vmem>>, vector<8x128xf32>,
    return
  }
  func.func @transform_0(%arg0: i32, %arg1: i32) -> (i32, i32) {
    %c0_i32 = arith.constant 0 : i32
    %c0_i32_0 = arith.constant 0 : i32
    return %arg1, %c0_i32 : i32, i32
  }
  func.func @transform_1(%arg0: i32, %arg1: i32) -> (i32, i32) {
    %c0_i32 = arith.constant 0 : i32
    %c0_i32_0 = arith.constant 0 : i32
    %c0_i32_1 = arith.constant 0 : i32
    return %c0_i32, %c0_i32_0 : i32, i32
  }
  func.func @transform_2(%arg0: i32, %arg1: i32) -> (i32, i32) {
    %c0_i32 = arith.constant 0 : i32
    %c0_i32_0 = arith.constant 0 : i32
    %c0_i32_1 = arith.constant 0 : i32
    return %c0_i32, %c0_i32_0 : i32, i32
  }
  func.func @transform_3(%arg0: i32, %arg1: i32) -> (i32, i32) {
    %c0_i32 = arith.constant 0 : i32
    %c0_i32_0 = arith.constant 0 : i32
    return %arg0, %c0_i32 : i32, i32
  }
  func.func @transform_4(%arg0: i32, %arg1: i32) -> (i32, i32) {
    %c0_i32 = arith.constant 0 : i32
    %c0_i32_0 = arith.constant 0 : i32
    return %arg0, %c0_i32 : i32, i32
  }
  func.func @transform_5(%arg0: i32, %arg1: i32) -> (i32, i32) {
    %c0_i32 = arith.constant 0 : i32
    %c0_i32_0 = arith.constant 0 : i32
    return %c0_i32, %arg0 : i32, i32
  }
  func.func @transform_6(%arg0: i32, %arg1: i32) -> (i32, i32) {
    %c0_i32 = arith.constant 0 : i32
    return %arg1, %arg0 : i32, i32
  }
}

</mosaic_0001>

<llo_original>
// kernel: tpu_custom_call.1
$region0: #{tpu_custom_call.1}
  #allocation0 [shape = 'u32[]', space=smem, size = 0x4, offset = 0x4, fixed_abs, tag = 'smem constant byte address 0x4 - core index']
  #allocation1 [shape = 'u32[144,128]{1,0:T(1,128)}', space=vmem, size = 0x12000, scoped, tag = 'internal scratch']
  %s0 = inlined_call_operand.vmem [shape: f32[8,16], index: 0, kind: input, shape index: {}]
  %s1 = inlined_call_operand.vmem [shape: f32[1,16], index: 1, kind: input, shape index: {}]
  %s2 = inlined_call_operand.vmem [shape: f32[1,16], index: 2, kind: input, shape index: {}]
  %s3 = inlined_call_operand.vmem [shape: bf16[128,128], index: 3, kind: input, shape index: {}]
  %s4 = inlined_call_operand.vmem [shape: bf16[128,16], index: 4, kind: input, shape index: {}]
  %s5 = inlined_call_operand.vmem [shape: f32[1,128], index: 5, kind: input, shape index: {}]
  %s6 = inlined_call_operand.hbm [shape: f32[8,128], index: 6, kind: output, shape index: {}]
  %s7 = sld [smem:[#allocation0]]
  $region34: #{tpu_custom_call.1} parent=0
    _
  %s9 = ssub.s32 1, %s7
  %s10 = scalar_select 0, %s9, %s7
  $region1: #{tpu_custom_call.1} parent=0
    #allocation2 [shape = 'u8[4096]{0}', space=vmem, size = 0x1000, scoped, tag = 'output window, operand 0, single buffered']
    #allocation3 [shape = 's32[1]{0}', space=sflag, size = 0x4, scoped, tag = 'scoped memory for tpu_custom_call.1']
    %11 = vsyncpa [#allocation3], 0
    // Predicated region
    $region2: #{tpu_custom_call.1} parent=1 // pred_check
      _
    $region3: #{tpu_custom_call.1} parent=1 // pred_check_branch
      %13 = sbr.rel (0) target = $region5
    $region4: #{tpu_custom_call.1} parent=1 // pred_region
      _
    $region5: #{tpu_custom_call.1} parent=1 // pred_fallthru
      _
    // Predicated region
    $region6: #{tpu_custom_call.1} parent=1 // pred_check
      _
    $region7: #{tpu_custom_call.1} parent=1 // pred_check_branch
      %15 = sbr.rel (0) target = $region9
    $region8: #{tpu_custom_call.1} parent=1 // pred_region
      _
    $region9: #{tpu_custom_call.1} parent=1 // pred_fallthru
      _
    // Predicated region
    $region10: #{tpu_custom_call.1} parent=1 // pred_check
      _
    $region11: #{tpu_custom_call.1} parent=1 // pred_check_branch
      %17 = sbr.rel (0) target = $region13
    $region12: #{tpu_custom_call.1} parent=1 // pred_region
      _
    $region13: #{tpu_custom_call.1} parent=1 // pred_fallthru
      _
    // Predicated region
    $region14: #{tpu_custom_call.1} parent=1 // pred_check
      _
    $region15: #{tpu_custom_call.1} parent=1 // pred_check_branch
      %19 = sbr.rel (0) target = $region17
    $region16: #{tpu_custom_call.1} parent=1 // pred_region
      _
    $region17: #{tpu_custom_call.1} parent=1 // pred_fallthru
      _
    // Predicated region
    $region18: #{tpu_custom_call.1} parent=1 // pred_check
      _
    $region19: #{tpu_custom_call.1} parent=1 // pred_check_branch
      %21 = sbr.rel (0) target = $region21
    $region20: #{tpu_custom_call.1} parent=1 // pred_region
      _
    $region21: #{tpu_custom_call.1} parent=1 // pred_fallthru
      _
    // Predicated region
    $region22: #{tpu_custom_call.1} parent=1 // pred_check
      _
    $region23: #{tpu_custom_call.1} parent=1 // pred_check_branch
      %23 = sbr.rel (0) target = $region25
    $region24: #{tpu_custom_call.1} parent=1 // pred_region
      _
    $region25: #{tpu_custom_call.1} parent=1 // pred_fallthru
      _
    %v25 = vld [vmem:[%s0] sm:$0xff]
    %vm26 = vcmask 130048
    %v27 = vsel %vm26, %v25, 0.0
    %28 = vadd.xlane.f32.xlu0 %v27
    %v29 = vpop.xlane.xlu0 %28
    %v30 = vrcp.pop 16.0
    %v31 = vmul.f32 %v29, %v30
    %v32 = vsub.f32 %v25, %v31
    %v33 = vmul.f32 %v32, %v32
    %v34 = vsel %vm26, %v33, 0.0
    %35 = vadd.xlane.f32.xlu0 %v34
    %v36 = vpop.xlane.xlu0 %35
    %v37 = vmul.f32 %v36, %v30
    %v38 = vadd.f32 %v37, 1e-05
    %v39 = vrsqrt.pop %v38
    %v40 = vmul.f32 %v32, %v39
    %v41 = vld [vmem:[%s1] sm:$0x1]
    %v43 = vlaneseq
    %v44 = vshrl.u32 %v43, 7
    %v45 = vsub.s32 0, %v44
    %v46 = vrot.slane %v41, %v45
    %v48 = vmul.f32 %v40, %v46
    %v49 = vld [vmem:[%s2] sm:$0x1]
    %v51 = vlaneseq
    %v52 = vshrl.u32 %v51, 7
    %v53 = vsub.s32 0, %v52
    %v54 = vrot.slane %v49, %v53
    %v56 = vadd.f32 %v48, %v54
    %v57 = vmul.f32 %v56, 1.75
    %v58 = vsub.f32 %v57, -3.5
    %v59 = vmul.f32 %v58, %v58
    %v60 = vsub.f32 0.0, %v59
    %v61 = vmul.f32 %v60, 1.442695
    %v62 = vpow.pop %v61
    %v63 = vsub.f32 %v57, -2.5
    %v64 = vmul.f32 %v63, %v63
    %v65 = vsub.f32 0.0, %v64
    %v66 = vmul.f32 %v65, 1.442695
    %v67 = vpow.pop %v66
    %v68 = vsub.f32 %v57, -1.5
    %v69 = vmul.f32 %v68, %v68
    %v70 = vsub.f32 0.0, %v69
    %v71 = vmul.f32 %v70, 1.442695
    %v72 = vpow.pop %v71
    %v73 = vsub.f32 %v57, -0.5
    %v74 = vmul.f32 %v73, %v73
    %v75 = vsub.f32 0.0, %v74
    %v76 = vmul.f32 %v75, 1.442695
    %v77 = vpow.pop %v76
    %v78 = vsub.f32 %v57, 0.5
    %v79 = vmul.f32 %v78, %v78
    %v80 = vsub.f32 0.0, %v79
    %v81 = vmul.f32 %v80, 1.442695
    %v82 = vpow.pop %v81
    %v83 = vsub.f32 %v57, 1.5
    %v84 = vmul.f32 %v83, %v83
    %v85 = vsub.f32 0.0, %v84
    %v86 = vmul.f32 %v85, 1.442695
    %v87 = vpow.pop %v86
    %v88 = vsub.f32 %v57, 2.5
    %v89 = vmul.f32 %v88, %v88
    %v90 = vsub.f32 0.0, %v89
    %v91 = vmul.f32 %v90, 1.442695
    %v92 = vpow.pop %v91
    %v93 = vsub.f32 %v57, 3.5
    %v94 = vmul.f32 %v93, %v93
    %v95 = vsub.f32 0.0, %v94
    %v96 = vmul.f32 %v95, 1.442695
    %v97 = vpow.pop %v96
    %99 = vrot.lane.b32.xlu0 %v67, 16
    %v100 = vpop.permute.xlu0 %99
    %103 = vrot.lane.b32.xlu0 %v72, 32
    %v104 = vpop.permute.xlu0 %103
    %107 = vrot.lane.b32.xlu0 %v77, 48
    %v108 = vpop.permute.xlu0 %107
    %111 = vrot.lane.b32.xlu0 %v82, 64
    %v112 = vpop.permute.xlu0 %111
    %115 = vrot.lane.b32.xlu0 %v87, 80
    %v116 = vpop.permute.xlu0 %115
    %119 = vrot.lane.b32.xlu0 %v92, 96
    %v120 = vpop.permute.xlu0 %119
    %123 = vrot.lane.b32.xlu0 %v97, 112
    %v124 = vpop.permute.xlu0 %123
    %v126 = vsel %vm26, %v62, %v100
    %vm127 = vcmask 261120
    %v128 = vsel %vm127, %v126, %v104
    %vm129 = vcmask 392192
    %v130 = vsel %vm129, %v128, %v108
    %vm131 = vcmask 523264
    %v132 = vsel %vm131, %v130, %v112
    %vm133 = vcmask 654336
    %v134 = vsel %vm133, %v132, %v116
    %vm135 = vcmask 785408
    %v136 = vsel %vm135, %v134, %v120
    %vm137 = vcmask 916480
    %v138 = vsel %vm137, %v136, %v124
    %v139 = vxor.u32 %v25, 2147483648
    %v140 = vmul.f32 %v139, 1.442695
    %v141 = vpow.pop %v140
    %v142 = vadd.f32 %v141, 1.0
    %v143 = vrcp.pop %v142
    %v144 = vmul.f32 1.0, %v143
    %v145 = vmul.f32 %v25, %v144
    %v146 = vpack.c.bf16 %v138, %v138
    %v147 = vld [vmem:[%s3] sm:$0xf]
    %v148 = vld [vmem:[%s3 + $0x4] sm:$0xf]
    %v149 = vld [vmem:[%s3 + $0x8] sm:$0xf]
    %v150 = vld [vmem:[%s3 + $0xc] sm:$0xf]
    %v151 = vld [vmem:[%s3 + $0x10] sm:$0xf]
    %v152 = vld [vmem:[%s3 + $0x14] sm:$0xf]
    %v153 = vld [vmem:[%s3 + $0x18] sm:$0xf]
    %v154 = vld [vmem:[%s3 + $0x1c] sm:$0xf]
    %v155 = vld [vmem:[%s3 + $0x20] sm:$0xf]
    %v156 = vld [vmem:[%s3 + $0x24] sm:$0xf]
    %v157 = vld [vmem:[%s3 + $0x28] sm:$0xf]
    %v158 = vld [vmem:[%s3 + $0x2c] sm:$0xf]
    %v159 = vld [vmem:[%s3 + $0x30] sm:$0xf]
    %v160 = vld [vmem:[%s3 + $0x34] sm:$0xf]
    %v161 = vld [vmem:[%s3 + $0x38] sm:$0xf]
    %v162 = vld [vmem:[%s3 + $0x3c] sm:$0xf]
    %v163 = vpack.c.bf16 %v145, %v145
    %v164 = vld [vmem:[%s4] sm:$0xf]
    %v165 = vld [vmem:[%s4 + $0x4] sm:$0xf]
    %v166 = vld [vmem:[%s4 + $0x8] sm:$0xf]
    %v167 = vld [vmem:[%s4 + $0xc] sm:$0xf]
    %v168 = vld [vmem:[%s4 + $0x10] sm:$0xf]
    %v169 = vld [vmem:[%s4 + $0x14] sm:$0xf]
    %v170 = vld [vmem:[%s4 + $0x18] sm:$0xf]
    %v171 = vld [vmem:[%s4 + $0x1c] sm:$0xf]
    %v172 = vld [vmem:[%s4 + $0x20] sm:$0xf]
    %v173 = vld [vmem:[%s4 + $0x24] sm:$0xf]
    %v174 = vld [vmem:[%s4 + $0x28] sm:$0xf]
    %v175 = vld [vmem:[%s4 + $0x2c] sm:$0xf]
    %v176 = vld [vmem:[%s4 + $0x30] sm:$0xf]
    %v177 = vld [vmem:[%s4 + $0x34] sm:$0xf]
    %v178 = vld [vmem:[%s4 + $0x38] sm:$0xf]
    %v179 = vld [vmem:[%s4 + $0x3c] sm:$0xf]
    %v196 = vunpack.c.l.b16 %v164
    %v197 = vunpack.c.l.b16 %v165
    %v198 = vunpack.c.l.b16 %v166
    %v199 = vunpack.c.l.b16 %v167
    %v200 = vunpack.c.l.b16 %v168
    %v201 = vunpack.c.l.b16 %v169
    %v202 = vunpack.c.l.b16 %v170
    %v203 = vunpack.c.l.b16 %v171
    %v204 = vunpack.c.l.b16 %v172
    %v205 = vunpack.c.l.b16 %v173
    %v206 = vunpack.c.l.b16 %v174
    %v207 = vunpack.c.l.b16 %v175
    %v208 = vunpack.c.l.b16 %v176
    %v209 = vunpack.c.l.b16 %v177
    %v210 = vunpack.c.l.b16 %v178
    %v211 = vunpack.c.l.b16 %v179
    %v212 = vpack.c.b16 %v197, %v196
    %v213 = vpack.c.b16 %v199, %v198
    %v214 = vpack.c.b16 %v201, %v200
    %v215 = vpack.c.b16 %v203, %v202
    %v216 = vpack.c.b16 %v205, %v204
    %v217 = vpack.c.b16 %v207, %v206
    %v218 = vpack.c.b16 %v209, %v208
    %v219 = vpack.c.b16 %v211, %v210
    %v221 = vsel %vm26, %v163, 0
    %v224 = vsel %vm26, %v212, 0
    %v227 = vsel %vm26, %v213, 0
    %v230 = vsel %vm26, %v214, 0
    %v233 = vsel %vm26, %v215, 0
    %v236 = vsel %vm26, %v216, 0
    %v239 = vsel %vm26, %v217, 0
    %v242 = vsel %vm26, %v218, 0
    %v245 = vsel %vm26, %v219, 0
    %247 = vmatprep.subr.bf16.mxu0 0
    %248 = vmatpush1.bf16.xpose.msra.mxu0 %v245
    %249 = vmatprep.subr.bf16.mxu0 0
    %250 = vmatpush1.bf16.xpose.msra.mxu0 %v242
    %251 = vmatprep.subr.bf16.mxu0 0
    %252 = vmatpush1.bf16.xpose.msra.mxu0 %v239
    %253 = vmatprep.subr.bf16.mxu0 0
    %254 = vmatpush1.bf16.xpose.msra.mxu0 %v236
    %255 = vmatprep.subr.bf16.mxu0 0
    %256 = vmatpush1.bf16.xpose.msra.mxu0 %v233
    %257 = vmatprep.subr.bf16.mxu0 0
    %258 = vmatpush1.bf16.xpose.msra.mxu0 %v230
    %259 = vmatprep.subr.bf16.mxu0 0
    %260 = vmatpush1.bf16.xpose.msra.mxu0 %v227
    %261 = vmatprep.subr.bf16.mxu0 0
    %262 = vmatpush1.bf16.xpose.msra.mxu0 %v224
    %263 = vmatprep.subr.bf16.mxu0 0
    %264 = vmatpush2.bf16.xpose.msra.mxu0 0
    %265 = vmatprep.subr.bf16.mxu0 0
    %266 = vmatpush2.bf16.xpose.msra.mxu0 0
    %267 = vmatprep.subr.bf16.mxu0 0
    %268 = vmatpush2.bf16.xpose.msra.mxu0 0
    %269 = vmatprep.subr.bf16.mxu0 0
    %270 = vmatpush2.bf16.xpose.msra.mxu0 0
    %271 = vmatprep.subr.bf16.mxu0 0
    %272 = vmatpush2.bf16.xpose.msra.mxu0 0
    %273 = vmatprep.subr.bf16.mxu0 0
    %274 = vmatpush2.bf16.xpose.msra.mxu0 0
    %275 = vmatprep.subr.bf16.mxu0 0
    %276 = vmatpush2.bf16.xpose.msra.mxu0 0
    %277 = vmatprep.subr.bf16.mxu0 0
    %278 = vmatpush2.bf16.xpose.msra.mxu0 0
    %279 = vmatprep.mubr.bf16.mxu0 0
    %280 = vmatmul.mubr.bf16.gmra.mxu0 %v221
    %v281 = vpop.f32.mrf.mxu0
    %v282 = vadd.f32 0.0, %v281
    %v283 = vpop.f32.mrf.mxu0
    %v284 = vpop.f32.mrf.mxu0
    %v285 = vpop.f32.mrf.mxu0
    %286 = vdwg.mxu0
    %v303 = vunpack.c.l.b16 %v147
    %v304 = vunpack.c.l.b16 %v148
    %v305 = vunpack.c.l.b16 %v149
    %v306 = vunpack.c.l.b16 %v150
    %v307 = vunpack.c.l.b16 %v151
    %v308 = vunpack.c.l.b16 %v152
    %v309 = vunpack.c.l.b16 %v153
    %v310 = vunpack.c.l.b16 %v154
    %v311 = vunpack.c.l.b16 %v155
    %v312 = vunpack.c.l.b16 %v156
    %v313 = vunpack.c.l.b16 %v157
    %v314 = vunpack.c.l.b16 %v158
    %v315 = vunpack.c.l.b16 %v159
    %v316 = vunpack.c.l.b16 %v160
    %v317 = vunpack.c.l.b16 %v161
    %v318 = vunpack.c.l.b16 %v162
    %v319 = vpack.c.b16 %v304, %v303
    %v320 = vpack.c.b16 %v306, %v305
    %v321 = vpack.c.b16 %v308, %v307
    %v322 = vpack.c.b16 %v310, %v309
    %v323 = vpack.c.b16 %v312, %v311
    %v324 = vpack.c.b16 %v314, %v313
    %v325 = vpack.c.b16 %v316, %v315
    %v326 = vpack.c.b16 %v318, %v317
    %335 = vmatprep.subr.bf16.mxu0 0
    %336 = vmatpush1.bf16.xpose.msra.mxu0 %v326
    %337 = vmatprep.subr.bf16.mxu0 0
    %338 = vmatpush1.bf16.xpose.msra.mxu0 %v325
    %339 = vmatprep.subr.bf16.mxu0 0
    %340 = vmatpush1.bf16.xpose.msra.mxu0 %v324
    %341 = vmatprep.subr.bf16.mxu0 0
    %342 = vmatpush1.bf16.xpose.msra.mxu0 %v323
    %343 = vmatprep.subr.bf16.mxu0 0
    %344 = vmatpush1.bf16.xpose.msra.mxu0 %v322
    %345 = vmatprep.subr.bf16.mxu0 0
    %346 = vmatpush1.bf16.xpose.msra.mxu0 %v321
    %347 = vmatprep.subr.bf16.mxu0 0
    %348 = vmatpush1.bf16.xpose.msra.mxu0 %v320
    %349 = vmatprep.subr.bf16.mxu0 0
    %350 = vmatpush1.bf16.xpose.msra.mxu0 %v319
    %351 = vmatprep.subr.bf16.mxu0 0
    %352 = vmatpush2.bf16.xpose.msra.mxu0 0
    %353 = vmatprep.subr.bf16.mxu0 0
    %354 = vmatpush2.bf16.xpose.msra.mxu0 0
    %355 = vmatprep.subr.bf16.mxu0 0
    %356 = vmatpush2.bf16.xpose.msra.mxu0 0
    %357 = vmatprep.subr.bf16.mxu0 0
    %358 = vmatpush2.bf16.xpose.msra.mxu0 0
    %359 = vmatprep.subr.bf16.mxu0 0
    %360 = vmatpush2.bf16.xpose.msra.mxu0 0
    %361 = vmatprep.subr.bf16.mxu0 0
    %362 = vmatpush2.bf16.xpose.msra.mxu0 0
    %363 = vmatprep.subr.bf16.mxu0 0
    %364 = vmatpush2.bf16.xpose.msra.mxu0 0
    %365 = vmatprep.subr.bf16.mxu0 0
    %366 = vmatpush2.bf16.xpose.msra.mxu0 0
    %367 = vmatprep.mubr.bf16.mxu0 0
    %368 = vmatmul.mubr.bf16.gmra.mxu0 %v146
    %v369 = vpop.f32.mrf.mxu0
    %v370 = vadd.f32 %v282, %v369
    %v371 = vpop.f32.mrf.mxu0
    %v372 = vpop.f32.mrf.mxu0
    %v373 = vpop.f32.mrf.mxu0
    %374 = vdwg.mxu0
    %v375 = vld [vmem:[%s5] sm:$0x1]
    %v377 = vlaneseq
    %v378 = vshrl.u32 %v377, 7
    %v379 = vsub.s32 0, %v378
    %v380 = vrot.slane %v375, %v379
    %v382 = vadd.f32 %v370, %v380
    %383 = vst [vmem:[#allocation2] sm:$0xff] %v382
    // Predicated region
    $region26: #{tpu_custom_call.1} parent=1 // pred_check
      _
    $region27: #{tpu_custom_call.1} parent=1 // pred_check_branch
      %385 = sbr.rel (0) target = $region29
    $region28: #{tpu_custom_call.1} parent=1 // pred_region
      %s387 = ssub.s32 128, 128
      %388 = vsyncadd [#allocation3], %s387
      %s390 = sshll.u32 [#allocation2], 4
      %s391 = int_to_ptr.vmem [resolvable:$true] %s390
      %393 = dma.vmem_to_hbm [thread:$0]  %s391, 128, %s6, [#allocation3]
    $region29: #{tpu_custom_call.1} parent=1 // pred_fallthru
      _
    // Predicated region
    $region30: #{tpu_custom_call.1} parent=1 // pred_check
      _
    $region31: #{tpu_custom_call.1} parent=1 // pred_check_branch
      %395 = sbr.rel (0) target = $region33
    $region32: #{tpu_custom_call.1} parent=1 // pred_region
      %396 = dma.done [#allocation3], 128
    $region33: #{tpu_custom_call.1} parent=1 // pred_fallthru
      _
    %397 = vsyncpa [#allocation3], 1

</llo_original>
